<compile_context>
chip_gen: v7x
topology: tpu7x:2x2x1
jax: 0.10.0
libtpu: 0.0.40
codegen_flags: <defaults>
</compile_context>

<pallas_src>
import jax
import jax.numpy as jnp
from jax.experimental import pallas as pl
from jax.experimental.pallas import tpu as pltpu

_LANE = 128
_SUBLANE = 8
_ROW_WIDTH = 512  # lane-dense slab width for the flatten fast path


def _ts_kernel(temp_ref, logits_ref, out_ref):
    # temp_ref: (1,) f32 scalar temperature in SMEM
    # logits_ref / out_ref: (block_r, block_c) tile in VMEM
    t = temp_ref[0]
    out_ref[...] = (logits_ref[...] / t).astype(out_ref.dtype)


def _round_up(x, m):
    return ((x + m - 1) // m) * m


def _tpu_params():
    """Per-generation block budget / VMEM limit / core-count heuristics."""
    try:
        info = pltpu.get_tpu_info()
        vmem = getattr(info, "vmem_capacity_bytes", None)
        vmem = int(vmem) if vmem is not None else None
    except Exception:
        vmem = None
    if vmem is not None and vmem <= (96 << 20):
        # v7x-class: 64 MiB VMEM per TensorCore, ~3.2 TB/s HBM, 2 TCs per chip.
        return {"block_bytes": 8 << 20, "vmem_limit": 48 << 20, "multi_core": True}
    if vmem is not None:
        # v5e / v6e class: 128 MiB VMEM, single TensorCore.
        return {"block_bytes": 4 << 20, "vmem_limit": 32 << 20, "multi_core": False}
    # Unknown backend / query failed: conservative defaults (fit 16 MiB scoped VMEM).
    return {"block_bytes": 2 << 20, "vmem_limit": None, "multi_core": False}


def _choose_block_rows(rows, row_bytes, pack, params):
    budget = params["block_bytes"]
    block_r = max(pack, (budget // max(row_bytes, 1) // pack) * pack)
    if block_r >= rows:
        block_r = rows  # single block over rows: full-dim block is always legal
    if params["multi_core"] and rows >= 2 * pack:
        steps = -(-rows // block_r)
        if steps == 1:
            # Split into 2 steps so v7x's two TensorCores both get work.
            block_r = _round_up(-(-rows // 2), pack)
        elif steps % 2 == 1:
            # Prefer an even step count to avoid a 2-vs-1 core imbalance.
            cand = _round_up(-(-rows // (steps + 1)), pack)
            if cand >= pack and (-(-rows // cand)) % 2 == 0:
                block_r = cand
    return max(block_r, 1)


def _ts_call(x2d, temp, params):
    rows, cols = x2d.shape
    itemsize = jnp.dtype(x2d.dtype).itemsize
    pack = max(_SUBLANE, 32 // itemsize)  # 8 f32 / 16 bf16 / 32 int8
    budget = params["block_bytes"]

    # Column blocking: keep the full minor dim when it fits the per-block budget at
    # the minimal row granularity; otherwise tile it in 128-lane multiples.
    if cols <= _LANE or cols * itemsize * pack <= budget:
        block_c = cols
    else:
        block_c = (budget // (itemsize * pack * _LANE)) * _LANE
        block_c = max(_LANE, min(block_c, (cols // _LANE) * _LANE))

    block_r = _choose_block_rows(rows, block_c * itemsize, pack, params)
    grid = (pl.cdiv(rows, block_r), pl.cdiv(cols, block_c))

    return pl.pallas_call(
        _ts_kernel,
        out_shape=jax.ShapeDtypeStruct((rows, cols), x2d.dtype),
        grid_spec=pltpu.PrefetchScalarGridSpec(
            num_scalar_prefetch=0,
            grid=grid,
            in_specs=[
                pl.BlockSpec(memory_space=pltpu.SMEM),                  # temperature (1,)
                pl.BlockSpec((block_r, block_c), lambda i, j: (i, j)),  # logits tile
            ],
            out_specs=pl.BlockSpec((block_r, block_c), lambda i, j: (i, j)),
        ),
        compiler_params=pltpu.CompilerParams(
            dimension_semantics=("parallel", "parallel"),
            vmem_limit_bytes=params["vmem_limit"],
        ),
    )(temp, x2d)


def ts_forward(batch_logits: jax.Array, temperature) -> jax.Array:
    """Pallas TPU kernel for TS.forward: batch_logits / temperature."""
    x = jnp.asarray(batch_logits)
    temp = jnp.asarray(temperature, dtype=jnp.float32).reshape((1,))
    orig_shape = x.shape
    n = x.size

    # Degenerate cases: no work for a Pallas grid.
    if x.ndim == 0 or n == 0:
        return (x / temp[0]).astype(x.dtype)

    params = _tpu_params()

    # View the input as a 2-D slab using only free (contiguous) reshapes.
    cols = x.shape[-1] if x.ndim > 1 else n
    if cols % _LANE != 0 and n % _ROW_WIDTH == 0:
        # Lane-dense slab fast path: unmasked 512-wide stores, no padding needed.
        x2d = x.reshape((n // _ROW_WIDTH, _ROW_WIDTH))
    elif x.ndim == 1:
        x2d = x.reshape((1, n))
    else:
        x2d = x.reshape((-1, cols))

    out2d = _ts_call(x2d, temp, params)
    return out2d.reshape(orig_shape)


# TODO(synk): TS.optimze (SGD/NLL temperature tuning loop) is host-side training
# logic, not part of the forward pass; not translated to Pallas.


if __name__ == "__main__":
    key = jax.random.PRNGKey(0)
    temperature = jnp.float32(1.5)  # TS.__init__ default is 1; use 1.5 to exercise the scale

    # Small case matching the module's 2-D logit convention (single full-dims block).
    B, C = 8, 32
    batch_logits = jax.random.normal(key, (B, C), dtype=jnp.float32)
    out = ts_forward(batch_logits, temperature)
    jax.block_until_ready(out)
    ref = batch_logits / temperature
    assert out.shape == batch_logits.shape and out.dtype == batch_logits.dtype
    assert jnp.allclose(out, ref, rtol=1e-6, atol=1e-6)

    # Larger case: C=1000 (not a 128 multiple) but size % 512 == 0 -> padless slab path.
    key2 = jax.random.PRNGKey(1)
    B2, C2 = 64, 1000
    logits2 = jax.random.normal(key2, (B2, C2), dtype=jnp.float32)
    out2 = ts_forward(logits2, temperature)
    jax.block_until_ready(out2)
    ref2 = logits2 / temperature
    assert out2.shape == logits2.shape and out2.dtype == logits2.dtype
    assert jnp.allclose(out2, ref2, rtol=1e-6, atol=1e-6)

    # Misaligned 3-D case: direct full-C tiling path (no pad / slice copies).
    key3 = jax.random.PRNGKey(2)
    logits3 = jax.random.normal(key3, (2, 4, 37), dtype=jnp.float32)
    out3 = ts_forward(logits3, temperature)
    jax.block_until_ready(out3)
    ref3 = logits3 / temperature
    assert out3.shape == logits3.shape and out3.dtype == logits3.dtype
    assert jnp.allclose(out3, ref3, rtol=1e-6, atol=1e-6)

    print("KERNEL_OK")
</pallas_src>

<mosaic_0001>
module attributes {stable_mosaic.version = 11 : i64} {
  func.func @_ts_kernel(%arg0: i32, %arg1: i32, %arg2: memref<1xf32, #tpu.memory_space<smem>>, %arg3: memref<8x32xf32, #tpu.memory_space<vmem>>, %arg4: memref<8x32xf32, #tpu.memory_space<vmem>>) attributes {dimension_semantics = [#tpu.dimension_semantics<parallel>, #tpu.dimension_semantics<parallel>], iteration_bounds = array<i64: 1, 1>, scalar_prefetch = 0 : i64, scratch_operands = 0 : i64, tpu.core_type = #tpu.core_type<tc>, window_params = [{transform_indices = @transform_0, window_bounds = array<i64: 1>}, {transform_indices = @transform_1, window_bounds = array<i64: 8, 32>}, {transform_indices = @transform_2, window_bounds = array<i64: 8, 32>}]} {
    %c0 = arith.constant 0 : index
    %0 = memref.load %arg2[%c0] : memref<1xf32, #tpu.memory_space<smem>>
    %c0_0 = arith.constant 0 : index
    %c0_1 = arith.constant 0 : index
    %1 = vector.load %arg3[%c0_0, %c0_1] : memref<8x32xf32, #tpu.memory_space<vmem>>, vector<8x32xf32>
    %2 = vector.broadcast %0 : f32 to vector<8x32xf32>
    %3 = arith.divf %1, %2 : vector<8x32xf32>
    %c0_2 = arith.constant 0 : index
    %c0_3 = arith.constant 0 : index
    %4 = vector.load %arg4[%c0_2, %c0_3] : memref<8x32xf32, #tpu.memory_space<vmem>>, vector<8x32xf32>
    tpu.vector_store %arg4[%c0_2, %c0_3], %3 {strides = array<i32>} : memref<8x32xf32, #tpu.memory_space<vmem>>, vector<8x32xf32>,
    return
  }
  func.func @transform_0(%arg0: i32, %arg1: i32) -> i32 {
    %c0_i32 = arith.constant 0 : i32
    %c0_i32_0 = arith.constant 0 : i32
    return %c0_i32 : i32
  }
  func.func @transform_1(%arg0: i32, %arg1: i32) -> (i32, i32) {
    %c0_i32 = arith.constant 0 : i32
    return %arg0, %arg1 : i32, i32
  }
  func.func @transform_2(%arg0: i32, %arg1: i32) -> (i32, i32) {
    %c0_i32 = arith.constant 0 : i32
    return %arg0, %arg1 : i32, i32
  }
}

</mosaic_0001>

<llo_original>
// kernel: tpu_custom_call.1
$region0: #{tpu_custom_call.1}
  #allocation0 [shape = 'u32[]', space=smem, size = 0x4, offset = 0x4, fixed_abs, tag = 'smem constant byte address 0x4 - core index']
  #allocation1 [shape = 'u32[144,128]{1,0:T(1,128)}', space=vmem, size = 0x12000, scoped, tag = 'internal scratch']
  #allocation2 [shape = 'f32[1]{0:T(128)S(6)}', space=smem, size = 0x200, scoped, tag = 'scoped memory for tpu_custom_call.1']
  %s0 = inlined_call_operand.<no memory space> [shape: f32[1], index: 0, kind: input, shape index: {}]
  %s1 = inlined_call_operand.hbm [shape: f32[8,32], index: 1, kind: input, shape index: {}]
  %s2 = inlined_call_operand.hbm [shape: f32[8,32], index: 2, kind: output, shape index: {}]
  %s3 = sld [smem:[#allocation0]]
  $region22: #{tpu_custom_call.1} parent=0
    _
  %s5 = ssub.s32 1, %s3
  %s6 = scalar_select 0, %s5, %s3
  %7 = sst [smem:[#allocation2]] %s0
  $region1: #{tpu_custom_call.1} parent=0
    #allocation3 [shape = 'u8[4096]{0}', space=vmem, size = 0x1000, scoped, tag = 'input window, operand 1, single buffered']
    #allocation4 [shape = 's32[1]{0}', space=sflag, size = 0x4, scoped, tag = 'scoped memory for tpu_custom_call.1']
    #allocation5 [shape = 's32[1]{0}', space=sflag, size = 0x4, scoped, tag = 'scoped memory for tpu_custom_call.1']
    #allocation6 [shape = 'u8[4096]{0}', space=vmem, size = 0x1000, scoped, tag = 'output window, operand 0, single buffered']
    %8 = vsyncpa [#allocation4], 0
    %9 = vsyncpa [#allocation5], 0
    // Predicated region
    $region2: #{tpu_custom_call.1} parent=1 // pred_check
      _
    $region3: #{tpu_custom_call.1} parent=1 // pred_check_branch
      %11 = sbr.rel (0) target = $region5
    $region4: #{tpu_custom_call.1} parent=1 // pred_region
      _
    $region5: #{tpu_custom_call.1} parent=1 // pred_fallthru
      _
    // Predicated region
    $region6: #{tpu_custom_call.1} parent=1 // pred_check
      _
    $region7: #{tpu_custom_call.1} parent=1 // pred_check_branch
      %13 = sbr.rel (0) target = $region9
    $region8: #{tpu_custom_call.1} parent=1 // pred_region
      %s15 = ssub.s32 128, 128
      %16 = vsyncadd [#allocation4], %s15
      %s18 = sshll.u32 [#allocation3], 4
      %s19 = int_to_ptr.vmem [resolvable:$true] %s18
      %21 = dma.hbm_to_vmem [thread:$0]  %s1, 128, %s19, [#allocation4]
    $region9: #{tpu_custom_call.1} parent=1 // pred_fallthru
      _
    // Predicated region
    $region10: #{tpu_custom_call.1} parent=1 // pred_check
      _
    $region11: #{tpu_custom_call.1} parent=1 // pred_check_branch
      %23 = sbr.rel (0) target = $region13
    $region12: #{tpu_custom_call.1} parent=1 // pred_region
      %24 = dma.done [#allocation4], 128
    $region13: #{tpu_custom_call.1} parent=1 // pred_fallthru
      _
    %s25 = sld [smem:[#allocation2]]
    %v26 = vld [vmem:[#allocation3] sm:$0xff]
    %v27 = vstv %s25
    %v28 = vrcp.pop %v27
    %v29 = vmul.f32 %v26, %v28
    %vm30 = vcmask 261120
    %31 = vst.msk [vmem:[#allocation6] sm:$0xff] %vm30, %v29
    // Predicated region
    $region14: #{tpu_custom_call.1} parent=1 // pred_check
      _
    $region15: #{tpu_custom_call.1} parent=1 // pred_check_branch
      %33 = sbr.rel (0) target = $region17
    $region16: #{tpu_custom_call.1} parent=1 // pred_region
      %s35 = ssub.s32 128, 128
      %36 = vsyncadd [#allocation5], %s35
      %s38 = sshll.u32 [#allocation6], 4
      %s39 = int_to_ptr.vmem [resolvable:$true] %s38
      %41 = dma.vmem_to_hbm [thread:$0]  %s39, 128, %s2, [#allocation5]
    $region17: #{tpu_custom_call.1} parent=1 // pred_fallthru
      _
    // Predicated region
    $region18: #{tpu_custom_call.1} parent=1 // pred_check
      _
    $region19: #{tpu_custom_call.1} parent=1 // pred_check_branch
      %43 = sbr.rel (0) target = $region21
    $region20: #{tpu_custom_call.1} parent=1 // pred_region
      %44 = dma.done [#allocation5], 128
    $region21: #{tpu_custom_call.1} parent=1 // pred_fallthru
      _
    %45 = vsyncpa [#allocation4], 1
    %46 = vsyncpa [#allocation5], 1

</llo_original>
